<compile_context>
chip_gen: v7x
topology: tpu7x:2x2x1
jax: 0.10.0
libtpu: 0.0.40
codegen_flags: <defaults>
</compile_context>

<pallas_src>
import functools
import math

import jax
import jax.numpy as jnp
from jax import lax
from jax.experimental import pallas as pl
from jax.experimental.pallas import tpu as pltpu


def _round_up(x: int, m: int) -> int:
    return ((x + m - 1) // m) * m


def _diff_attn_kernel(xq_ref, xk_ref, xv_ref,
                      wqT_ref, wkT_ref, wvT_ref, woT_ref,
                      bq_ref, bk_ref, bv_ref, bo_ref,
                      out_ref, *, inv_sqrt_d: float):
    xq = xq_ref[0]                      # (TQ, Ep)  bf16 query tile
    xk = xk_ref[0]                      # (S,  Ep)  bf16 keys (whole seq)
    xv = xv_ref[0]                      # (S,  Ep)  bf16 values (whole seq)

    # Projections (PyTorch nn.Linear: x @ W^T + b).  W^T is pre-computed on
    # the host, so the MXU gets a contiguous RHS.  f32 accumulate, f32 bias.
    q = jnp.dot(xq, wqT_ref[...], preferred_element_type=jnp.float32) + bq_ref[...]
    k = jnp.dot(xk, wkT_ref[...], preferred_element_type=jnp.float32) + bk_ref[...]
    v = jnp.dot(xv, wvT_ref[...], preferred_element_type=jnp.float32) + bv_ref[...]

    # scores = q @ k^T / sqrt(d): contract last dims directly (no transpose).
    scores = lax.dot_general(
        q.astype(jnp.bfloat16), k.astype(jnp.bfloat16),
        dimension_numbers=(((1,), (1,)), ((), ())),
        preferred_element_type=jnp.float32) * inv_sqrt_d        # (TQ, S) f32

    # Numerically stable softmax along keys (f32 on the VPU/EUP).
    m = jnp.max(scores, axis=-1, keepdims=True)
    e = jnp.exp(scores - m)
    p = e * pl.reciprocal(jnp.sum(e, axis=-1, keepdims=True), approx=True)

    # attended = softmax @ v, then output projection (bf16 MXU, f32 acc).
    attended = jnp.dot(p.astype(jnp.bfloat16), v.astype(jnp.bfloat16),
                       preferred_element_type=jnp.float32)      # (TQ, dp)
    out = jnp.dot(attended.astype(jnp.bfloat16), woT_ref[...],
                  preferred_element_type=jnp.float32) + bo_ref[...]   # (TQ, Ep)

    out_ref[0] = out.astype(out_ref.dtype)


def diff_attn_forward(query, key, value, params):
    """DiffAttn forward via a Pallas TPU kernel.

    query/key/value: (B, S, E) float32
    params: dict with W_q, b_q, W_k, b_k, W_v, b_v, W_out, b_out
            (PyTorch layout: W_* is (out_features, in_features)).
    """
    B, S, E = query.shape
    d = params["W_q"].shape[0]
    out_dtype = query.dtype

    LANE = 128
    Ep = _round_up(E, LANE)   # lane-padded embedding dim
    dp = _round_up(d, LANE)   # lane-padded head dim

    # Query-axis tile; K/V stay whole per batch (score tile is (TQ, S) f32).
    TQ = 128 if (S % 128 == 0) else S
    num_q = S // TQ

    bf16 = jnp.bfloat16
    f32 = jnp.float32

    def pad_act(x):   # (B, S, E) -> (B, S, Ep), bf16 for the MXU
        return jnp.pad(x, ((0, 0), (0, 0), (0, Ep - E))).astype(bf16)

    xq = pad_act(query)
    xk = pad_act(key)
    xv = pad_act(value)

    def pad_w(w_t, rows, cols):   # pre-transposed weight, zero-padded, bf16
        return jnp.pad(
            w_t, ((0, rows - w_t.shape[0]), (0, cols - w_t.shape[1]))
        ).astype(bf16)

    wqT = pad_w(params["W_q"].T, Ep, dp)
    wkT = pad_w(params["W_k"].T, Ep, dp)
    wvT = pad_w(params["W_v"].T, Ep, dp)
    woT = pad_w(params["W_out"].T, dp, Ep)

    def pad_b(b, n):              # bias -> (1, n) f32, zero-padded
        return jnp.pad(b, (0, n - b.shape[0])).reshape(1, n).astype(f32)

    bq = pad_b(params["b_q"], dp)
    bk = pad_b(params["b_k"], dp)
    bv = pad_b(params["b_v"], dp)
    bo = pad_b(params["b_out"], Ep)

    # Constant index_maps: loop-invariant weights/biases are fetched once and
    # stay resident across grid steps (block index never changes).
    def resident(shape):
        return pl.BlockSpec(shape, lambda b, qi: (0, 0))

    kernel = functools.partial(_diff_attn_kernel, inv_sqrt_d=1.0 / math.sqrt(d))

    out_padded = pl.pallas_call(
        kernel,
        out_shape=jax.ShapeDtypeStruct((B, S, Ep), out_dtype),
        grid_spec=pltpu.PrefetchScalarGridSpec(
            num_scalar_prefetch=0,
            grid=(B, num_q),
            in_specs=[
                pl.BlockSpec((1, TQ, Ep), lambda b, qi: (b, qi, 0)),  # query tile
                pl.BlockSpec((1, S, Ep), lambda b, qi: (b, 0, 0)),    # key  (whole)
                pl.BlockSpec((1, S, Ep), lambda b, qi: (b, 0, 0)),    # value(whole)
                resident((Ep, dp)),   # W_q^T
                resident((Ep, dp)),   # W_k^T
                resident((Ep, dp)),   # W_v^T
                resident((dp, Ep)),   # W_out^T
                resident((1, dp)),    # b_q
                resident((1, dp)),    # b_k
                resident((1, dp)),    # b_v
                resident((1, Ep)),    # b_out
            ],
            out_specs=pl.BlockSpec((1, TQ, Ep), lambda b, qi: (b, qi, 0)),
        ),
        compiler_params=pltpu.CompilerParams(
            dimension_semantics=("parallel", "parallel"),
            vmem_limit_bytes=32 * 1024 * 1024,
        ),
    )(xq, xk, xv, wqT, wkT, wvT, woT, bq, bk, bv, bo)

    # Drop the lane padding.
    return out_padded[:, :, :E]


def _reference_forward(query, key, value, params):
    d = params["W_q"].shape[0]
    q = query @ params["W_q"].T + params["b_q"]
    k = key @ params["W_k"].T + params["b_k"]
    v = value @ params["W_v"].T + params["b_v"]
    scores = jnp.einsum("bsd,btd->bst", q, k) / math.sqrt(d)
    weights = jax.nn.softmax(scores, axis=-1)
    attended = jnp.einsum("bst,btd->bsd", weights, v)
    return attended @ params["W_out"].T + params["b_out"]


if __name__ == "__main__":
    B, S, E, d = 2, 8, 32, 16

    key0 = jax.random.PRNGKey(0)
    kq, kk, kv = jax.random.split(key0, 3)
    query = jax.random.normal(kq, (B, S, E), dtype=jnp.float32)
    key_in = jax.random.normal(kk, (B, S, E), dtype=jnp.float32)
    value = jax.random.normal(kv, (B, S, E), dtype=jnp.float32)

    # Deterministic synthetic parameter init (shapes from nn.Linear in __init__).
    pkey = jax.random.PRNGKey(1)
    pk = jax.random.split(pkey, 8)
    scale_in = 1.0 / math.sqrt(E)
    scale_d = 1.0 / math.sqrt(d)
    params = {
        "W_q": jax.random.uniform(pk[0], (d, E), jnp.float32, -scale_in, scale_in),
        "b_q": jax.random.uniform(pk[1], (d,), jnp.float32, -scale_in, scale_in),
        "W_k": jax.random.uniform(pk[2], (d, E), jnp.float32, -scale_in, scale_in),
        "b_k": jax.random.uniform(pk[3], (d,), jnp.float32, -scale_in, scale_in),
        "W_v": jax.random.uniform(pk[4], (d, E), jnp.float32, -scale_in, scale_in),
        "b_v": jax.random.uniform(pk[5], (d,), jnp.float32, -scale_in, scale_in),
        "W_out": jax.random.uniform(pk[6], (E, d), jnp.float32, -scale_d, scale_d),
        "b_out": jax.random.uniform(pk[7], (E,), jnp.float32, -scale_d, scale_d),
        # lambda_param (1, 1, d) exists in the module but is unused in forward().
        "lambda_param": jnp.ones((1, 1, d), jnp.float32),
    }

    out = diff_attn_forward(query, key_in, value, params)
    out = jax.block_until_ready(out)

    ref = _reference_forward(query, key_in, value, params)
    assert out.shape == (B, S, E)
    # bf16 MXU inputs + approx reciprocal -> slightly looser tolerance than f32.
    assert jnp.allclose(out, ref, atol=3e-2, rtol=3e-2), "mismatch vs reference"

    print("KERNEL_OK")
</pallas_src>

<mosaic_0001>
module attributes {stable_mosaic.version = 11 : i64} {
  func.func @_diff_attn_kernel(%arg0: i32, %arg1: i32, %arg2: memref<1x8x128xbf16, #tpu.memory_space<vmem>>, %arg3: memref<1x8x128xbf16, #tpu.memory_space<vmem>>, %arg4: memref<1x8x128xbf16, #tpu.memory_space<vmem>>, %arg5: memref<128x128xbf16, #tpu.memory_space<vmem>>, %arg6: memref<128x128xbf16, #tpu.memory_space<vmem>>, %arg7: memref<128x128xbf16, #tpu.memory_space<vmem>>, %arg8: memref<128x128xbf16, #tpu.memory_space<vmem>>, %arg9: memref<1x128xf32, #tpu.memory_space<vmem>>, %arg10: memref<1x128xf32, #tpu.memory_space<vmem>>, %arg11: memref<1x128xf32, #tpu.memory_space<vmem>>, %arg12: memref<1x128xf32, #tpu.memory_space<vmem>>, %arg13: memref<1x8x128xf32, #tpu.memory_space<vmem>>) attributes {dimension_semantics = [#tpu.dimension_semantics<parallel>, #tpu.dimension_semantics<parallel>], iteration_bounds = array<i64: 2, 1>, scalar_prefetch = 0 : i64, scratch_operands = 0 : i64, tpu.core_type = #tpu.core_type<tc>, window_params = [{transform_indices = @transform_0, window_bounds = array<i64: 1, 8, 128>}, {transform_indices = @transform_1, window_bounds = array<i64: 1, 8, 128>}, {transform_indices = @transform_2, window_bounds = array<i64: 1, 8, 128>}, {pipeline_mode = #tpu.pipeline_mode<synchronous>, transform_indices = @transform_3, window_bounds = array<i64: 128, 128>}, {pipeline_mode = #tpu.pipeline_mode<synchronous>, transform_indices = @transform_4, window_bounds = array<i64: 128, 128>}, {pipeline_mode = #tpu.pipeline_mode<synchronous>, transform_indices = @transform_5, window_bounds = array<i64: 128, 128>}, {pipeline_mode = #tpu.pipeline_mode<synchronous>, transform_indices = @transform_6, window_bounds = array<i64: 128, 128>}, {pipeline_mode = #tpu.pipeline_mode<synchronous>, transform_indices = @transform_7, window_bounds = array<i64: 1, 128>}, {pipeline_mode = #tpu.pipeline_mode<synchronous>, transform_indices = @transform_8, window_bounds = array<i64: 1, 128>}, {pipeline_mode = #tpu.pipeline_mode<synchronous>, transform_indices = @transform_9, window_bounds = array<i64: 1, 128>}, {pipeline_mode = #tpu.pipeline_mode<synchronous>, transform_indices = @transform_10, window_bounds = array<i64: 1, 128>}, {transform_indices = @transform_11, window_bounds = array<i64: 1, 8, 128>}]} {
    %c0 = arith.constant 0 : index
    %c0_0 = arith.constant 0 : index
    %c0_1 = arith.constant 0 : index
    %0 = vector.load %arg2[%c0, %c0_0, %c0_1] : memref<1x8x128xbf16, #tpu.memory_space<vmem>>, vector<1x8x128xbf16>
    %1 = vector.shape_cast %0 : vector<1x8x128xbf16> to vector<8x128xbf16>
    %c0_2 = arith.constant 0 : index
    %c0_3 = arith.constant 0 : index
    %c0_4 = arith.constant 0 : index
    %2 = vector.load %arg3[%c0_2, %c0_3, %c0_4] : memref<1x8x128xbf16, #tpu.memory_space<vmem>>, vector<1x8x128xbf16>
    %3 = vector.shape_cast %2 : vector<1x8x128xbf16> to vector<8x128xbf16>
    %c0_5 = arith.constant 0 : index
    %c0_6 = arith.constant 0 : index
    %c0_7 = arith.constant 0 : index
    %4 = vector.load %arg4[%c0_5, %c0_6, %c0_7] : memref<1x8x128xbf16, #tpu.memory_space<vmem>>, vector<1x8x128xbf16>
    %5 = vector.shape_cast %4 : vector<1x8x128xbf16> to vector<8x128xbf16>
    %c0_8 = arith.constant 0 : index
    %c0_9 = arith.constant 0 : index
    %6 = vector.load %arg5[%c0_8, %c0_9] : memref<128x128xbf16, #tpu.memory_space<vmem>>, vector<128x128xbf16>
    %cst = arith.constant dense<0.000000e+00> : vector<8x128xf32>
    %7 = tpu.matmul %1, %6, %cst {dimension_numbers = #tpu.dot_dimension_numbers<[1], [0], [0], [1], [0, 0, 1, 1], [], []>} : vector<8x128xbf16>, vector<128x128xbf16>, vector<8x128xf32> -> vector<8x128xf32>
    %c0_10 = arith.constant 0 : index
    %c0_11 = arith.constant 0 : index
    %8 = vector.load %arg9[%c0_10, %c0_11] : memref<1x128xf32, #tpu.memory_space<vmem>>, vector<1x128xf32>
    %9 = vector.broadcast %8 : vector<1x128xf32> to vector<8x128xf32>
    %10 = arith.addf %7, %9 : vector<8x128xf32>
    %c0_12 = arith.constant 0 : index
    %c0_13 = arith.constant 0 : index
    %11 = vector.load %arg6[%c0_12, %c0_13] : memref<128x128xbf16, #tpu.memory_space<vmem>>, vector<128x128xbf16>
    %cst_14 = arith.constant dense<0.000000e+00> : vector<8x128xf32>
    %12 = tpu.matmul %3, %11, %cst_14 {dimension_numbers = #tpu.dot_dimension_numbers<[1], [0], [0], [1], [0, 0, 1, 1], [], []>} : vector<8x128xbf16>, vector<128x128xbf16>, vector<8x128xf32> -> vector<8x128xf32>
    %c0_15 = arith.constant 0 : index
    %c0_16 = arith.constant 0 : index
    %13 = vector.load %arg10[%c0_15, %c0_16] : memref<1x128xf32, #tpu.memory_space<vmem>>, vector<1x128xf32>
    %14 = vector.broadcast %13 : vector<1x128xf32> to vector<8x128xf32>
    %15 = arith.addf %12, %14 : vector<8x128xf32>
    %c0_17 = arith.constant 0 : index
    %c0_18 = arith.constant 0 : index
    %16 = vector.load %arg7[%c0_17, %c0_18] : memref<128x128xbf16, #tpu.memory_space<vmem>>, vector<128x128xbf16>
    %cst_19 = arith.constant dense<0.000000e+00> : vector<8x128xf32>
    %17 = tpu.matmul %5, %16, %cst_19 {dimension_numbers = #tpu.dot_dimension_numbers<[1], [0], [0], [1], [0, 0, 1, 1], [], []>} : vector<8x128xbf16>, vector<128x128xbf16>, vector<8x128xf32> -> vector<8x128xf32>
    %c0_20 = arith.constant 0 : index
    %c0_21 = arith.constant 0 : index
    %18 = vector.load %arg11[%c0_20, %c0_21] : memref<1x128xf32, #tpu.memory_space<vmem>>, vector<1x128xf32>
    %19 = vector.broadcast %18 : vector<1x128xf32> to vector<8x128xf32>
    %20 = arith.addf %17, %19 : vector<8x128xf32>
    %21 = arith.truncf %10 : vector<8x128xf32> to vector<8x128xbf16>
    %22 = arith.truncf %15 : vector<8x128xf32> to vector<8x128xbf16>
    %cst_22 = arith.constant dense<0.000000e+00> : vector<8x8xf32>
    %23 = tpu.matmul %21, %22, %cst_22 {dimension_numbers = #tpu.dot_dimension_numbers<[1], [1], [0], [0], [0, 0, 1, 0], [], []>} : vector<8x128xbf16>, vector<8x128xbf16>, vector<8x8xf32> -> vector<8x8xf32>
    %cst_23 = arith.constant 2.500000e-01 : f32
    %24 = vector.broadcast %cst_23 : f32 to vector<8x8xf32>
    %25 = arith.mulf %23, %24 : vector<8x8xf32>
    %cst_24 = arith.constant dense<0xFF800000> : vector<8xf32>
    %26 = vector.multi_reduction <maximumf>, %25, %cst_24 [1] : vector<8x8xf32> to vector<8xf32>
    %27 = vector.shape_cast %26 : vector<8xf32> to vector<8x1xf32>
    %28 = vector.broadcast %27 : vector<8x1xf32> to vector<8x8xf32>
    %29 = arith.subf %25, %28 : vector<8x8xf32>
    %30 = math.exp %29 : vector<8x8xf32>
    %cst_25 = arith.constant dense<0.000000e+00> : vector<8xf32>
    %31 = vector.multi_reduction <add>, %30, %cst_25 [1] : vector<8x8xf32> to vector<8xf32>
    %32 = vector.shape_cast %31 : vector<8xf32> to vector<8x1xf32>
    %33 = tpu.reciprocal %32 {approx = true} : vector<8x1xf32> -> vector<8x1xf32>
    %34 = vector.broadcast %33 : vector<8x1xf32> to vector<8x8xf32>
    %35 = arith.mulf %30, %34 : vector<8x8xf32>
    %36 = arith.truncf %35 : vector<8x8xf32> to vector<8x8xbf16>
    %37 = arith.truncf %20 : vector<8x128xf32> to vector<8x128xbf16>
    %cst_26 = arith.constant dense<0.000000e+00> : vector<8x128xf32>
    %38 = tpu.matmul %36, %37, %cst_26 {dimension_numbers = #tpu.dot_dimension_numbers<[1], [0], [0], [1], [0, 0, 1, 1], [], []>} : vector<8x8xbf16>, vector<8x128xbf16>, vector<8x128xf32> -> vector<8x128xf32>
    %39 = arith.truncf %38 : vector<8x128xf32> to vector<8x128xbf16>
    %c0_27 = arith.constant 0 : index
    %c0_28 = arith.constant 0 : index
    %40 = vector.load %arg8[%c0_27, %c0_28] : memref<128x128xbf16, #tpu.memory_space<vmem>>, vector<128x128xbf16>
    %cst_29 = arith.constant dense<0.000000e+00> : vector<8x128xf32>
    %41 = tpu.matmul %39, %40, %cst_29 {dimension_numbers = #tpu.dot_dimension_numbers<[1], [0], [0], [1], [0, 0, 1, 1], [], []>} : vector<8x128xbf16>, vector<128x128xbf16>, vector<8x128xf32> -> vector<8x128xf32>
    %c0_30 = arith.constant 0 : index
    %c0_31 = arith.constant 0 : index
    %42 = vector.load %arg12[%c0_30, %c0_31] : memref<1x128xf32, #tpu.memory_space<vmem>>, vector<1x128xf32>
    %43 = vector.broadcast %42 : vector<1x128xf32> to vector<8x128xf32>
    %44 = arith.addf %41, %43 : vector<8x128xf32>
    %c0_32 = arith.constant 0 : index
    %c0_33 = arith.constant 0 : index
    %c0_34 = arith.constant 0 : index
    %45 = vector.load %arg13[%c0_32, %c0_33, %c0_34] : memref<1x8x128xf32, #tpu.memory_space<vmem>>, vector<1x8x128xf32>
    %46 = vector.shape_cast %45 : vector<1x8x128xf32> to vector<8x128xf32>
    %47 = vector.shape_cast %44 : vector<8x128xf32> to vector<1x8x128xf32>
    tpu.vector_store %arg13[%c0_32, %c0_33, %c0_34], %47 {strides = array<i32>} : memref<1x8x128xf32, #tpu.memory_space<vmem>>, vector<1x8x128xf32>,
    return
  }
  func.func @transform_0(%arg0: i32, %arg1: i32) -> (i32, i32, i32) {
    %c0_i32 = arith.constant 0 : i32
    %c0_i32_0 = arith.constant 0 : i32
    return %arg0, %arg1, %c0_i32 : i32, i32, i32
  }
  func.func @transform_1(%arg0: i32, %arg1: i32) -> (i32, i32, i32) {
    %c0_i32 = arith.constant 0 : i32
    %c0_i32_0 = arith.constant 0 : i32
    %c0_i32_1 = arith.constant 0 : i32
    return %arg0, %c0_i32, %c0_i32_0 : i32, i32, i32
  }
  func.func @transform_2(%arg0: i32, %arg1: i32) -> (i32, i32, i32) {
    %c0_i32 = arith.constant 0 : i32
    %c0_i32_0 = arith.constant 0 : i32
    %c0_i32_1 = arith.constant 0 : i32
    return %arg0, %c0_i32, %c0_i32_0 : i32, i32, i32
  }
  func.func @transform_3(%arg0: i32, %arg1: i32) -> (i32, i32) {
    %c0_i32 = arith.constant 0 : i32
    %c0_i32_0 = arith.constant 0 : i32
    %c0_i32_1 = arith.constant 0 : i32
    return %c0_i32, %c0_i32_0 : i32, i32
  }
  func.func @transform_4(%arg0: i32, %arg1: i32) -> (i32, i32) {
    %c0_i32 = arith.constant 0 : i32
    %c0_i32_0 = arith.constant 0 : i32
    %c0_i32_1 = arith.constant 0 : i32
    return %c0_i32, %c0_i32_0 : i32, i32
  }
  func.func @transform_5(%arg0: i32, %arg1: i32) -> (i32, i32) {
    %c0_i32 = arith.constant 0 : i32
    %c0_i32_0 = arith.constant 0 : i32
    %c0_i32_1 = arith.constant 0 : i32
    return %c0_i32, %c0_i32_0 : i32, i32
  }
  func.func @transform_6(%arg0: i32, %arg1: i32) -> (i32, i32) {
    %c0_i32 = arith.constant 0 : i32
    %c0_i32_0 = arith.constant 0 : i32
    %c0_i32_1 = arith.constant 0 : i32
    return %c0_i32, %c0_i32_0 : i32, i32
  }
  func.func @transform_7(%arg0: i32, %arg1: i32) -> (i32, i32) {
    %c0_i32 = arith.constant 0 : i32
    %c0_i32_0 = arith.constant 0 : i32
    %c0_i32_1 = arith.constant 0 : i32
    return %c0_i32, %c0_i32_0 : i32, i32
  }
  func.func @transform_8(%arg0: i32, %arg1: i32) -> (i32, i32) {
    %c0_i32 = arith.constant 0 : i32
    %c0_i32_0 = arith.constant 0 : i32
    %c0_i32_1 = arith.constant 0 : i32
    return %c0_i32, %c0_i32_0 : i32, i32
  }
  func.func @transform_9(%arg0: i32, %arg1: i32) -> (i32, i32) {
    %c0_i32 = arith.constant 0 : i32
    %c0_i32_0 = arith.constant 0 : i32
    %c0_i32_1 = arith.constant 0 : i32
    return %c0_i32, %c0_i32_0 : i32, i32
  }
  func.func @transform_10(%arg0: i32, %arg1: i32) -> (i32, i32) {
    %c0_i32 = arith.constant 0 : i32
    %c0_i32_0 = arith.constant 0 : i32
    %c0_i32_1 = arith.constant 0 : i32
    return %c0_i32, %c0_i32_0 : i32, i32
  }
  func.func @transform_11(%arg0: i32, %arg1: i32) -> (i32, i32, i32) {
    %c0_i32 = arith.constant 0 : i32
    %c0_i32_0 = arith.constant 0 : i32
    return %arg0, %arg1, %c0_i32 : i32, i32, i32
  }
}

</mosaic_0001>

<llo_original>
// kernel: tpu_custom_call.1
$region0: #{tpu_custom_call.1}
  #allocation0 [shape = 'u32[]', space=smem, size = 0x4, offset = 0x4, fixed_abs, tag = 'smem constant byte address 0x4 - core index']
  #allocation1 [shape = 'u32[144,128]{1,0:T(1,128)}', space=vmem, size = 0x12000, scoped, tag = 'internal scratch']
  %s0 = inlined_call_operand.hbm [shape: bf16[2,8,128], index: 0, kind: input, shape index: {}]
  %s1 = inlined_call_operand.hbm [shape: bf16[2,8,128], index: 1, kind: input, shape index: {}]
  %s2 = inlined_call_operand.hbm [shape: bf16[2,8,128], index: 2, kind: input, shape index: {}]
  %s3 = inlined_call_operand.hbm [shape: bf16[128,128], index: 3, kind: input, shape index: {}]
  %s4 = inlined_call_operand.hbm [shape: bf16[128,128], index: 4, kind: input, shape index: {}]
  %s5 = inlined_call_operand.hbm [shape: bf16[128,128], index: 5, kind: input, shape index: {}]
  %s6 = inlined_call_operand.hbm [shape: bf16[128,128], index: 6, kind: input, shape index: {}]
  %s7 = inlined_call_operand.vmem [shape: f32[1,128], index: 7, kind: input, shape index: {}]
  %s8 = inlined_call_operand.vmem [shape: f32[1,128], index: 8, kind: input, shape index: {}]
  %s9 = inlined_call_operand.vmem [shape: f32[1,128], index: 9, kind: input, shape index: {}]
  %s10 = inlined_call_operand.vmem [shape: f32[1,128], index: 10, kind: input, shape index: {}]
  %s11 = inlined_call_operand.hbm [shape: f32[2,8,128], index: 11, kind: output, shape index: {}]
  %s12 = sld [smem:[#allocation0]]
  $region105: #{tpu_custom_call.1} parent=0
    _
  %s14 = ssub.s32 1, %s12
  %s15 = scalar_select 0, %s14, %s12
  $region1: #{tpu_custom_call.1} parent=0
    #allocation2 [shape = 'u8[4096]{0}', space=vmem, size = 0x1000, scoped, tag = 'input window, operand 0']
    #allocation3 [shape = 's32[2]{0}', space=sflag, size = 0x8, scoped, tag = 'scoped memory for tpu_custom_call.1']
    #allocation4 [shape = 's32[2]{0}', space=sflag, size = 0x8, scoped, tag = 'scoped memory for tpu_custom_call.1']
    #allocation5 [shape = 'u8[4096]{0}', space=vmem, size = 0x1000, scoped, tag = 'input window, operand 1']
    #allocation6 [shape = 's32[2]{0}', space=sflag, size = 0x8, scoped, tag = 'scoped memory for tpu_custom_call.1']
    #allocation7 [shape = 'u8[4096]{0}', space=vmem, size = 0x1000, scoped, tag = 'input window, operand 2']
    #allocation8 [shape = 'u8[32768]{0}', space=vmem, size = 0x8000, scoped, tag = 'input window, operand 3, single buffered']
    #allocation9 [shape = 's32[1]{0}', space=sflag, size = 0x4, scoped, tag = 'scoped memory for tpu_custom_call.1']
    #allocation10 [shape = 'u8[32768]{0}', space=vmem, size = 0x8000, scoped, tag = 'input window, operand 4, single buffered']
    #allocation11 [shape = 'u8[32768]{0}', space=vmem, size = 0x8000, scoped, tag = 'input window, operand 5, single buffered']
    #allocation12 [shape = 's32[1]{0}', space=sflag, size = 0x4, scoped, tag = 'scoped memory for tpu_custom_call.1']
    #allocation13 [shape = 'u8[32768]{0}', space=vmem, size = 0x8000, scoped, tag = 'input window, operand 6, single buffered']
    #allocation14 [shape = 'u8[8192]{0}', space=vmem, size = 0x2000, scoped, tag = 'output window, operand 0']
    %16 = vsyncpa [#allocation3], 0
    %s17 = scalar_lea.sflag [#allocation3], 1
    %18 = vsyncpa %s17, 0
    %19 = vsyncpa [#allocation6], 0
    %s20 = scalar_lea.sflag [#allocation6], 1
    %21 = vsyncpa %s20, 0
    %22 = vsyncpa [#allocation9], 0
    %23 = vsyncpa [#allocation12], 0
    %24 = vsyncpa [#allocation4], 0
    %s25 = scalar_lea.sflag [#allocation4], 1
    %26 = vsyncpa %s25, 0
    loop: start=0, step=1, limit=4
    $region2: #{tpu_custom_call.1} parent=1 // loop_pre_header
      _
    $region3: #{tpu_custom_call.1} parent=1 // loop_header
      %s28 = sphi 0, %s32
      %p29 = scmp.ge.s32.totalorder %s28, 4
      %s35 = sphi 0, %s47
      %s36 = sphi 0, %s43
      %s37 = sphi 0, %s35
      %s38 = sphi 0, %s36
      %s39 = sphi 0, %s37
      %s40 = sphi 0, %s38
      %s52 = sphi 0, %s54
      %s55 = sphi 0, %s52
      %s56 = sphi 0, %s55
      %s72 = sphi 0, %s56
      %s78 = sphi 0, %s80
      %s81 = sphi 0, %s78
      %s82 = sphi 0, %s81
      %s98 = sphi 0, %s82
      %s104 = sphi 0, %s106
      %s107 = sphi 0, %s104
      %s108 = sphi 0, %s107
      %s124 = sphi 0, %s108
      %s128 = sphi 0, %s128
      %s130 = sphi 0, %s128
      %s131 = sphi 0, %s130
      %s145 = sphi 0, %s131
      %s149 = sphi 0, %s149
      %s151 = sphi 0, %s149
      %s152 = sphi 0, %s151
      %s166 = sphi 0, %s152
      %s170 = sphi 0, %s170
      %s172 = sphi 0, %s170
      %s173 = sphi 0, %s172
      %s187 = sphi 0, %s173
      %s191 = sphi 0, %s191
      %s193 = sphi 0, %s191
      %s194 = sphi 0, %s193
      %s208 = sphi 0, %s194
      %s212 = sphi 0, %s212
      %s214 = sphi 0, %s212
      %s215 = sphi 0, %s214
      %s229 = sphi 0, %s215
      %s233 = sphi 0, %s233
      %s235 = sphi 0, %s233
      %s236 = sphi 0, %s235
      %s250 = sphi 0, %s236
      %s254 = sphi 0, %s254
      %s256 = sphi 0, %s254
      %s257 = sphi 0, %s256
      %s271 = sphi 0, %s257
      %s275 = sphi 0, %s275
      %s277 = sphi 0, %s275
      %s278 = sphi 0, %s277
      %s292 = sphi 0, %s278
      %s300 = sphi 0, %s302
      %s303 = sphi 0, %s300
      %s304 = sphi 0, %s303
      %s320 = sphi 0, %s304
    $region4: #{tpu_custom_call.1} parent=1 // loop_header_branch
      %31 = sbr.rel (%p29) target = $region8
    $region5: #{tpu_custom_call.1} parent=1 // loop_body
      %s33 = ssub.s32 %s28, 1
      %s34 = ssub.s32 %s28, 2
      %s41 = sadd.s32 1, %s36
      %p42 = scmp.ge.s32.totalorder %s41, 1
      %s43 = scalar_select %p42, 0, %s41
      %s44 = sadd.s32 1, %s35
      %s45 = scalar_select %p42, %s44, %s35
      %p46 = scmp.ge.s32.totalorder %s45, 2
      %s47 = scalar_select %p46, 0, %s45
      %s48 = ssub.s32 %s35, %s47
      %s49 = ssub.s32 %s36, %s43
      %s50 = sor.u32 %s48, %s49
      %p51 = scmp.eq.s32.totalorder %s50, 0
      %s53 = sadd.s32 %s52, 1
      %s54 = scalar_select %p51, %s52, %s53
      %p57 = pneg %p51
      %p58 = scmp.eq.s32.totalorder %s28, 1
      %p59 = por %p57, %p58
      %p60 = scmp.ne.s32.totalorder %s52, %s55
      %p61 = scmp.eq.s32.totalorder %s28, 0
      %p62 = por %p60, %p61
      %p63 = scmp.ne.s32.totalorder %s52, %s55
      %p64 = scmp.eq.s32.totalorder %s33, 1
      %p65 = por %p63, %p64
      %p66 = scmp.ne.s32.totalorder %s55, %s56
      %p67 = scmp.eq.s32.totalorder %s33, 0
      %p68 = por %p66, %p67
      %p69 = scmp.ne.s32.totalorder %s55, %s56
      %p70 = scmp.eq.s32.totalorder %s34, 1
      %p71 = por %p69, %p70
      %p73 = scmp.ne.s32.totalorder %s56, %s72
      %p74 = scmp.eq.s32.totalorder %s34, 0
      %p75 = por %p73, %p74
      %s76 = ssub.s32 %s35, %s47
      %p77 = scmp.eq.s32.totalorder %s76, 0
      %s79 = sadd.s32 %s78, 1
      %s80 = scalar_select %p77, %s78, %s79
      %p83 = pneg %p77
      %p84 = scmp.eq.s32.totalorder %s28, 1
      %p85 = por %p83, %p84
      %p86 = scmp.ne.s32.totalorder %s78, %s81
      %p87 = scmp.eq.s32.totalorder %s28, 0
      %p88 = por %p86, %p87
      %p89 = scmp.ne.s32.totalorder %s78, %s81
      %p90 = scmp.eq.s32.totalorder %s33, 1
      %p91 = por %p89, %p90
      %p92 = scmp.ne.s32.totalorder %s81, %s82
      %p93 = scmp.eq.s32.totalorder %s33, 0
      %p94 = por %p92, %p93
      %p95 = scmp.ne.s32.totalorder %s81, %s82
      %p96 = scmp.eq.s32.totalorder %s34, 1
      %p97 = por %p95, %p96
      %p99 = scmp.ne.s32.totalorder %s82, %s98
      %p100 = scmp.eq.s32.totalorder %s34, 0
      %p101 = por %p99, %p100
      %s102 = ssub.s32 %s35, %s47
      %p103 = scmp.eq.s32.totalorder %s102, 0
      %s105 = sadd.s32 %s104, 1
      %s106 = scalar_select %p103, %s104, %s105
      %p109 = pneg %p103
      %p110 = scmp.eq.s32.totalorder %s28, 1
      %p111 = por %p109, %p110
      %p112 = scmp.ne.s32.totalorder %s104, %s107
      %p113 = scmp.eq.s32.totalorder %s28, 0
      %p114 = por %p112, %p113
      %p115 = scmp.ne.s32.totalorder %s104, %s107
      %p116 = scmp.eq.s32.totalorder %s33, 1
      %p117 = por %p115, %p116
      %p118 = scmp.ne.s32.totalorder %s107, %s108
      %p119 = scmp.eq.s32.totalorder %s33, 0
      %p120 = por %p118, %p119
      %p121 = scmp.ne.s32.totalorder %s107, %s108
      %p122 = scmp.eq.s32.totalorder %s34, 1
      %p123 = por %p121, %p122
      %p125 = scmp.ne.s32.totalorder %s108, %s124
      %p126 = scmp.eq.s32.totalorder %s34, 0
      %p127 = por %p125, %p126
      %s129 = sadd.s32 %s128, 1
      %p132 = scmp.eq.s32.totalorder %s28, 1
      %p133 = scmp.ne.s32.totalorder %s128, %s130
      %p134 = scmp.eq.s32.totalorder %s28, 0
      %p135 = por %p133, %p134
      %p136 = scmp.ne.s32.totalorder %s128, %s130
      %p137 = scmp.eq.s32.totalorder %s33, 1
      %p138 = por %p136, %p137
      %p139 = scmp.ne.s32.totalorder %s130, %s131
      %p140 = scmp.eq.s32.totalorder %s33, 0
      %p141 = por %p139, %p140
      %p142 = scmp.ne.s32.totalorder %s130, %s131
      %p143 = scmp.eq.s32.totalorder %s34, 1
      %p144 = por %p142, %p143
      %p146 = scmp.ne.s32.totalorder %s131, %s145
      %p147 = scmp.eq.s32.totalorder %s34, 0
      %p148 = por %p146, %p147
      %s150 = sadd.s32 %s149, 1
      %p153 = scmp.eq.s32.totalorder %s28, 1
      %p154 = scmp.ne.s32.totalorder %s149, %s151
      %p155 = scmp.eq.s32.totalorder %s28, 0
      %p156 = por %p154, %p155
      %p157 = scmp.ne.s32.totalorder %s149, %s151
      %p158 = scmp.eq.s32.totalorder %s33, 1
      %p159 = por %p157, %p158
      %p160 = scmp.ne.s32.totalorder %s151, %s152
      %p161 = scmp.eq.s32.totalorder %s33, 0
      %p162 = por %p160, %p161
      %p163 = scmp.ne.s32.totalorder %s151, %s152
      %p164 = scmp.eq.s32.totalorder %s34, 1
      %p165 = por %p163, %p164
      %p167 = scmp.ne.s32.totalorder %s152, %s166
      %p168 = scmp.eq.s32.totalorder %s34, 0
      %p169 = por %p167, %p168
      %s171 = sadd.s32 %s170, 1
      %p174 = scmp.eq.s32.totalorder %s28, 1
      %p175 = scmp.ne.s32.totalorder %s170, %s172
      %p176 = scmp.eq.s32.totalorder %s28, 0
      %p177 = por %p175, %p176
      %p178 = scmp.ne.s32.totalorder %s170, %s172
      %p179 = scmp.eq.s32.totalorder %s33, 1
      %p180 = por %p178, %p179
      %p181 = scmp.ne.s32.totalorder %s172, %s173
      %p182 = scmp.eq.s32.totalorder %s33, 0
      %p183 = por %p181, %p182
      %p184 = scmp.ne.s32.totalorder %s172, %s173
      %p185 = scmp.eq.s32.totalorder %s34, 1
      %p186 = por %p184, %p185
      %p188 = scmp.ne.s32.totalorder %s173, %s187
      %p189 = scmp.eq.s32.totalorder %s34, 0
      %p190 = por %p188, %p189
      %s192 = sadd.s32 %s191, 1
      %p195 = scmp.eq.s32.totalorder %s28, 1
      %p196 = scmp.ne.s32.totalorder %s191, %s193
      %p197 = scmp.eq.s32.totalorder %s28, 0
      %p198 = por %p196, %p197
      %p199 = scmp.ne.s32.totalorder %s191, %s193
      %p200 = scmp.eq.s32.totalorder %s33, 1
      %p201 = por %p199, %p200
      %p202 = scmp.ne.s32.totalorder %s193, %s194
      %p203 = scmp.eq.s32.totalorder %s33, 0
      %p204 = por %p202, %p203
      %p205 = scmp.ne.s32.totalorder %s193, %s194
      %p206 = scmp.eq.s32.totalorder %s34, 1
      %p207 = por %p205, %p206
      %p209 = scmp.ne.s32.totalorder %s194, %s208
      %p210 = scmp.eq.s32.totalorder %s34, 0
      %p211 = por %p209, %p210
      %s213 = sadd.s32 %s212, 1
      %p216 = scmp.eq.s32.totalorder %s28, 1
      %p217 = scmp.ne.s32.totalorder %s212, %s214
      %p218 = scmp.eq.s32.totalorder %s28, 0
      %p219 = por %p217, %p218
      %p220 = scmp.ne.s32.totalorder %s212, %s214
      %p221 = scmp.eq.s32.totalorder %s33, 1
      %p222 = por %p220, %p221
      %p223 = scmp.ne.s32.totalorder %s214, %s215
      %p224 = scmp.eq.s32.totalorder %s33, 0
      %p225 = por %p223, %p224
      %p226 = scmp.ne.s32.totalorder %s214, %s215
      %p227 = scmp.eq.s32.totalorder %s34, 1
      %p228 = por %p226, %p227
      %p230 = scmp.ne.s32.totalorder %s215, %s229
      %p231 = scmp.eq.s32.totalorder %s34, 0
      %p232 = por %p230, %p231
      %s234 = sadd.s32 %s233, 1
      %p237 = scmp.eq.s32.totalorder %s28, 1
      %p238 = scmp.ne.s32.totalorder %s233, %s235
      %p239 = scmp.eq.s32.totalorder %s28, 0
      %p240 = por %p238, %p239
      %p241 = scmp.ne.s32.totalorder %s233, %s235
      %p242 = scmp.eq.s32.totalorder %s33, 1
      %p243 = por %p241, %p242
      %p244 = scmp.ne.s32.totalorder %s235, %s236
      %p245 = scmp.eq.s32.totalorder %s33, 0
      %p246 = por %p244, %p245
      %p247 = scmp.ne.s32.totalorder %s235, %s236
      %p248 = scmp.eq.s32.totalorder %s34, 1
      %p249 = por %p247, %p248
      %p251 = scmp.ne.s32.totalorder %s236, %s250
      %p252 = scmp.eq.s32.totalorder %s34, 0
      %p253 = por %p251, %p252
      %s255 = sadd.s32 %s254, 1
      %p258 = scmp.eq.s32.totalorder %s28, 1
      %p259 = scmp.ne.s32.totalorder %s254, %s256
      %p260 = scmp.eq.s32.totalorder %s28, 0
      %p261 = por %p259, %p260
      %p262 = scmp.ne.s32.totalorder %s254, %s256
      %p263 = scmp.eq.s32.totalorder %s33, 1
      %p264 = por %p262, %p263
      %p265 = scmp.ne.s32.totalorder %s256, %s257
      %p266 = scmp.eq.s32.totalorder %s33, 0
      %p267 = por %p265, %p266
      %p268 = scmp.ne.s32.totalorder %s256, %s257
      %p269 = scmp.eq.s32.totalorder %s34, 1
      %p270 = por %p268, %p269
      %p272 = scmp.ne.s32.totalorder %s257, %s271
      %p273 = scmp.eq.s32.totalorder %s34, 0
      %p274 = por %p272, %p273
      %s276 = sadd.s32 %s275, 1
      %p279 = scmp.eq.s32.totalorder %s28, 1
      %p280 = scmp.ne.s32.totalorder %s275, %s277
      %p281 = scmp.eq.s32.totalorder %s28, 0
      %p282 = por %p280, %p281
      %p283 = scmp.ne.s32.totalorder %s275, %s277
      %p284 = scmp.eq.s32.totalorder %s33, 1
      %p285 = por %p283, %p284
      %p286 = scmp.ne.s32.totalorder %s277, %s278
      %p287 = scmp.eq.s32.totalorder %s33, 0
      %p288 = por %p286, %p287
      %p289 = scmp.ne.s32.totalorder %s277, %s278
      %p290 = scmp.eq.s32.totalorder %s34, 1
      %p291 = por %p289, %p290
      %p293 = scmp.ne.s32.totalorder %s278, %s292
      %p294 = scmp.eq.s32.totalorder %s34, 0
      %p295 = por %p293, %p294
      %s296 = ssub.s32 %s35, %s47
      %s297 = ssub.s32 %s36, %s43
      %s298 = sor.u32 %s296, %s297
      %p299 = scmp.eq.s32.totalorder %s298, 0
      %s301 = sadd.s32 %s300, 1
      %s302 = scalar_select %p299, %s300, %s301
      %p305 = pneg %p299
      %p306 = scmp.eq.s32.totalorder %s28, 1
      %p307 = por %p305, %p306
      %p308 = scmp.ne.s32.totalorder %s300, %s303
      %p309 = scmp.eq.s32.totalorder %s28, 0
      %p310 = por %p308, %p309
      %p311 = scmp.ne.s32.totalorder %s300, %s303
      %p312 = scmp.eq.s32.totalorder %s33, 1
      %p313 = por %p311, %p312
      %p314 = scmp.ne.s32.totalorder %s303, %s304
      %p315 = scmp.eq.s32.totalorder %s33, 0
      %p316 = por %p314, %p315
      %p317 = scmp.ne.s32.totalorder %s303, %s304
      %p318 = scmp.eq.s32.totalorder %s34, 1
      %p319 = por %p317, %p318
      %p321 = scmp.ne.s32.totalorder %s304, %s320
      %p322 = scmp.eq.s32.totalorder %s34, 0
      %p323 = por %p321, %p322
      %p324 = scmp.le.s32.totalorder 1, %s28
      %p325 = scmp.lt.s32.totalorder %s28, 3
      %p326 = pnand %p324, %p325
      %p327 = pneg %p326
      // Predicated region
      $region9: #{tpu_custom_call.1} parent=5 // pred_check
        _
      $region10: #{tpu_custom_call.1} parent=5 // pred_check_branch
        %329 = sbr.rel (%p326) target = $region12
      $region11: #{tpu_custom_call.1} parent=5 // pred_region
        %s330 = ssub.s32 %s28, 1
        // Predicated region
        $region13: #{tpu_custom_call.1} parent=11 // pred_check
          %p331 = pneg %p141
        $region14: #{tpu_custom_call.1} parent=11 // pred_check_branch
          %333 = sbr.rel (%p331) target = $region16
        $region15: #{tpu_custom_call.1} parent=11 // pred_region
          %s335 = ssub.s32 1024, 1024
          %336 = vsyncadd [#allocation9], %s335
          %s337 = sshll.u32 [#allocation8], 4
          %s338 = int_to_ptr.vmem [resolvable:$true] %s337
          %343 = dma.hbm_to_vmem [thread:$0]  %s3, 1024, %s338, [#allocation9], 64, 64, 4
        $region16: #{tpu_custom_call.1} parent=11 // pred_fallthru
          _
        // Predicated region
        $region17: #{tpu_custom_call.1} parent=11 // pred_check
          %p344 = pneg %p162
        $region18: #{tpu_custom_call.1} parent=11 // pred_check_branch
          %346 = sbr.rel (%p344) target = $region20
        $region19: #{tpu_custom_call.1} parent=11 // pred_region
          %s348 = ssub.s32 1024, 1024
          %349 = vsyncadd [#allocation9], %s348
          %s350 = sshll.u32 [#allocation10], 4
          %s351 = int_to_ptr.vmem [resolvable:$true] %s350
          %356 = dma.hbm_to_vmem [thread:$0]  %s4, 1024, %s351, [#allocation9], 64, 64, 4
        $region20: #{tpu_custom_call.1} parent=11 // pred_fallthru
          _
        // Predicated region
        $region21: #{tpu_custom_call.1} parent=11 // pred_check
          %p357 = pneg %p183
        $region22: #{tpu_custom_call.1} parent=11 // pred_check_branch
          %359 = sbr.rel (%p357) target = $region24
        $region23: #{tpu_custom_call.1} parent=11 // pred_region
          %s361 = ssub.s32 1024, 1024
          %362 = vsyncadd [#allocation12], %s361
          %s363 = sshll.u32 [#allocation11], 4
          %s364 = int_to_ptr.vmem [resolvable:$true] %s363
          %369 = dma.hbm_to_vmem [thread:$0]  %s5, 1024, %s364, [#allocation12], 64, 64, 4
        $region24: #{tpu_custom_call.1} parent=11 // pred_fallthru
          _
        // Predicated region
        $region25: #{tpu_custom_call.1} parent=11 // pred_check
          %p370 = pneg %p204
        $region26: #{tpu_custom_call.1} parent=11 // pred_check_branch
          %372 = sbr.rel (%p370) target = $region28
        $region27: #{tpu_custom_call.1} parent=11 // pred_region
          %s374 = ssub.s32 1024, 1024
          %375 = vsyncadd [#allocation12], %s374
          %s376 = sshll.u32 [#allocation13], 4
          %s377 = int_to_ptr.vmem [resolvable:$true] %s376
          %382 = dma.hbm_to_vmem [thread:$0]  %s6, 1024, %s377, [#allocation12], 64, 64, 4
        $region28: #{tpu_custom_call.1} parent=11 // pred_fallthru
          _
        // Predicated region
        $region29: #{tpu_custom_call.1} parent=11 // pred_check
          %p383 = pneg %p225
        $region30: #{tpu_custom_call.1} parent=11 // pred_check_branch
          %385 = sbr.rel (%p383) target = $region32
        $region31: #{tpu_custom_call.1} parent=11 // pred_region
          _
        $region32: #{tpu_custom_call.1} parent=11 // pred_fallthru
          _
        // Predicated region
        $region33: #{tpu_custom_call.1} parent=11 // pred_check
          %p386 = pneg %p246
        $region34: #{tpu_custom_call.1} parent=11 // pred_check_branch
          %388 = sbr.rel (%p386) target = $region36
        $region35: #{tpu_custom_call.1} parent=11 // pred_region
          _
        $region36: #{tpu_custom_call.1} parent=11 // pred_fallthru
          _
        // Predicated region
        $region37: #{tpu_custom_call.1} parent=11 // pred_check
          %p389 = pneg %p267
        $region38: #{tpu_custom_call.1} parent=11 // pred_check_branch
          %391 = sbr.rel (%p389) target = $region40
        $region39: #{tpu_custom_call.1} parent=11 // pred_region
          _
        $region40: #{tpu_custom_call.1} parent=11 // pred_fallthru
          _
        // Predicated region
        $region41: #{tpu_custom_call.1} parent=11 // pred_check
          %p392 = pneg %p288
        $region42: #{tpu_custom_call.1} parent=11 // pred_check_branch
          %394 = sbr.rel (%p392) target = $region44
        $region43: #{tpu_custom_call.1} parent=11 // pred_region
          _
        $region44: #{tpu_custom_call.1} parent=11 // pred_fallthru
          _
      $region12: #{tpu_custom_call.1} parent=5 // pred_fallthru
        _
      %p395 = scmp.lt.s32.totalorder %s28, 2
      // Predicated region
      $region45: #{tpu_custom_call.1} parent=5 // pred_check
        %p396 = pneg %p395
      $region46: #{tpu_custom_call.1} parent=5 // pred_check_branch
        %398 = sbr.rel (%p396) target = $region48
      $region47: #{tpu_custom_call.1} parent=5 // pred_region
        // Predicated region
        $region49: #{tpu_custom_call.1} parent=47 // pred_check
          %p399 = pneg %p62
        $region50: #{tpu_custom_call.1} parent=47 // pred_check_branch
          %401 = sbr.rel (%p399) target = $region52
        $region51: #{tpu_custom_call.1} parent=47 // pred_region
          %s402 = sand.u32 %s52, 1
          %s403 = scalar_lea.sflag [#allocation3], %s402
          %s404 = sand.u32 %s52, 1
          %s405 = smul.addr %s404, 4
          %s406 = scalar_lea.vmem [#allocation2], %s405
          %s408 = ssub.s32 64, 64
          %409 = vsyncadd %s403, %s408
          %s410 = sadd.s32 %s36, %s35
          %s411 = smul.addr %s410, 64
          %s412 = scalar_lea.hbm %s0, %s411
          %s414 = sshll.u32 %s406, 4
          %s415 = int_to_ptr.vmem [resolvable:$true] %s414
          %417 = dma.hbm_to_vmem [thread:$0]  %s412, 64, %s415, %s403
        $region52: #{tpu_custom_call.1} parent=47 // pred_fallthru
          _
        // Predicated region
        $region53: #{tpu_custom_call.1} parent=47 // pred_check
          %p418 = pneg %p88
        $region54: #{tpu_custom_call.1} parent=47 // pred_check_branch
          %420 = sbr.rel (%p418) target = $region56
        $region55: #{tpu_custom_call.1} parent=47 // pred_region
          %s421 = sand.u32 %s28, 1
          %s422 = scalar_lea.sflag [#allocation6], %s421
          %s423 = sand.u32 %s78, 1
          %s424 = smul.addr %s423, 4
          %s425 = scalar_lea.vmem [#allocation5], %s424
          %s427 = ssub.s32 64, 64
          %428 = vsyncadd %s422, %s427
          %s429 = smul.addr %s35, 64
          %s430 = scalar_lea.hbm %s1, %s429
          %s432 = sshll.u32 %s425, 4
          %s433 = int_to_ptr.vmem [resolvable:$true] %s432
          %435 = dma.hbm_to_vmem [thread:$0]  %s430, 64, %s433, %s422
        $region56: #{tpu_custom_call.1} parent=47 // pred_fallthru
          _
        // Predicated region
        $region57: #{tpu_custom_call.1} parent=47 // pred_check
          %p436 = pneg %p114
        $region58: #{tpu_custom_call.1} parent=47 // pred_check_branch
          %438 = sbr.rel (%p436) target = $region60
        $region59: #{tpu_custom_call.1} parent=47 // pred_region
          %s439 = sand.u32 %s28, 1
          %s440 = scalar_lea.sflag [#allocation6], %s439
          %s441 = sand.u32 %s104, 1
          %s442 = smul.addr %s441, 4
          %s443 = scalar_lea.vmem [#allocation7], %s442
          %s445 = ssub.s32 64, 64
          %446 = vsyncadd %s440, %s445
          %s447 = smul.addr %s35, 64
          %s448 = scalar_lea.hbm %s2, %s447
          %s450 = sshll.u32 %s443, 4
          %s451 = int_to_ptr.vmem [resolvable:$true] %s450
          %453 = dma.hbm_to_vmem [thread:$0]  %s448, 64, %s451, %s440
        $region60: #{tpu_custom_call.1} parent=47 // pred_fallthru
          _
      $region48: #{tpu_custom_call.1} parent=5 // pred_fallthru
        _
      %p454 = scmp.le.s32.totalorder 1, %s28
      %p455 = scmp.lt.s32.totalorder %s28, 3
      %p456 = pnand %p454, %p455
      %p457 = pneg %p456
      // Predicated region
      $region61: #{tpu_custom_call.1} parent=5 // pred_check
        _
      $region62: #{tpu_custom_call.1} parent=5 // pred_check_branch
        %459 = sbr.rel (%p456) target = $region64
      $region63: #{tpu_custom_call.1} parent=5 // pred_region
        %s460 = ssub.s32 %s28, 1
        %s461 = sand.u32 %s55, 1
        %s462 = scalar_lea.sflag [#allocation3], %s461
        %s463 = sand.u32 %s55, 1
        %s464 = smul.addr %s463, 4
        %s465 = scalar_lea.vmem [#allocation2], %s464
        // Predicated region
        $region65: #{tpu_custom_call.1} parent=63 // pred_check
          %p466 = pneg %p68
        $region66: #{tpu_custom_call.1} parent=63 // pred_check_branch
          %468 = sbr.rel (%p466) target = $region68
        $region67: #{tpu_custom_call.1} parent=63 // pred_region
          %469 = dma.done %s462, 64
        $region68: #{tpu_custom_call.1} parent=63 // pred_fallthru
          _
        %s470 = sand.u32 %s33, 1
        %s471 = scalar_lea.sflag [#allocation6], %s470
        %s472 = sand.u32 %s81, 1
        %s473 = smul.addr %s472, 4
        %s474 = scalar_lea.vmem [#allocation5], %s473
        // Predicated region
        $region69: #{tpu_custom_call.1} parent=63 // pred_check
          %p475 = pneg %p94
        $region70: #{tpu_custom_call.1} parent=63 // pred_check_branch
          %477 = sbr.rel (%p475) target = $region72
        $region71: #{tpu_custom_call.1} parent=63 // pred_region
          %478 = dma.done %s471, 64
        $region72: #{tpu_custom_call.1} parent=63 // pred_fallthru
          _
        %s479 = sand.u32 %s33, 1
        %s480 = scalar_lea.sflag [#allocation6], %s479
        %s481 = sand.u32 %s107, 1
        %s482 = smul.addr %s481, 4
        %s483 = scalar_lea.vmem [#allocation7], %s482
        // Predicated region
        $region73: #{tpu_custom_call.1} parent=63 // pred_check
          %p484 = pneg %p120
        $region74: #{tpu_custom_call.1} parent=63 // pred_check_branch
          %486 = sbr.rel (%p484) target = $region76
        $region75: #{tpu_custom_call.1} parent=63 // pred_region
          %487 = dma.done %s480, 64
        $region76: #{tpu_custom_call.1} parent=63 // pred_fallthru
          _
        // Predicated region
        $region77: #{tpu_custom_call.1} parent=63 // pred_check
          %p488 = pneg %p141
        $region78: #{tpu_custom_call.1} parent=63 // pred_check_branch
          %490 = sbr.rel (%p488) target = $region80
        $region79: #{tpu_custom_call.1} parent=63 // pred_region
          %491 = dma.done [#allocation9], 1024
        $region80: #{tpu_custom_call.1} parent=63 // pred_fallthru
          _
        // Predicated region
        $region81: #{tpu_custom_call.1} parent=63 // pred_check
          %p492 = pneg %p162
        $region82: #{tpu_custom_call.1} parent=63 // pred_check_branch
          %494 = sbr.rel (%p492) target = $region84
        $region83: #{tpu_custom_call.1} parent=63 // pred_region
          %495 = dma.done [#allocation9], 1024
        $region84: #{tpu_custom_call.1} parent=63 // pred_fallthru
          _
        // Predicated region
        $region85: #{tpu_custom_call.1} parent=63 // pred_check
          %p496 = pneg %p183
        $region86: #{tpu_custom_call.1} parent=63 // pred_check_branch
          %498 = sbr.rel (%p496) target = $region88
        $region87: #{tpu_custom_call.1} parent=63 // pred_region
          %499 = dma.done [#allocation12], 1024
        $region88: #{tpu_custom_call.1} parent=63 // pred_fallthru
          _
        // Predicated region
        $region89: #{tpu_custom_call.1} parent=63 // pred_check
          %p500 = pneg %p204
        $region90: #{tpu_custom_call.1} parent=63 // pred_check_branch
          %502 = sbr.rel (%p500) target = $region92
        $region91: #{tpu_custom_call.1} parent=63 // pred_region
          %503 = dma.done [#allocation12], 1024
        $region92: #{tpu_custom_call.1} parent=63 // pred_fallthru
          _
        %s504 = sand.u32 %s55, 1
        %s505 = scalar_lea.sflag [#allocation3], %s504
        %s506 = sand.u32 %s55, 1
        %s507 = smul.addr %s506, 4
        %s508 = scalar_lea.vmem [#allocation2], %s507
        %p509 = pneg %p68
        %p510 = pneg %p65
        %s511 = sand.u32 %s33, 1
        %s512 = scalar_lea.sflag [#allocation6], %s511
        %s513 = sand.u32 %s81, 1
        %s514 = smul.addr %s513, 4
        %s515 = scalar_lea.vmem [#allocation5], %s514
        %p516 = pneg %p94
        %p517 = pneg %p91
        %s518 = sand.u32 %s33, 1
        %s519 = scalar_lea.sflag [#allocation6], %s518
        %s520 = sand.u32 %s107, 1
        %s521 = smul.addr %s520, 4
        %s522 = scalar_lea.vmem [#allocation7], %s521
        %p523 = pneg %p120
        %p524 = pneg %p117
        %p525 = pneg %p141
        %p526 = pneg %p138
        %p527 = pneg %p162
        %p528 = pneg %p159
        %p529 = pneg %p183
        %p530 = pneg %p180
        %p531 = pneg %p204
        %p532 = pneg %p201
        %p533 = pneg %p225
        %p534 = pneg %p222
        %p535 = pneg %p246
        %p536 = pneg %p243
        %p537 = pneg %p267
        %p538 = pneg %p264
        %p539 = pneg %p288
        %p540 = pneg %p285
        %p541 = pneg %p316
        %p542 = pneg %p313
        %s543 = sand.u32 %s303, 1
        %s544 = scalar_lea.sflag [#allocation4], %s543
        %s545 = sand.u32 %s303, 1
        %s546 = smul.addr %s545, 8
        %s547 = scalar_lea.vmem [#allocation14], %s546
        %v549 = vld [vmem:[%s465] sm:$0xf]
        %v550 = vld [vmem:[%s474] sm:$0xf]
        %v551 = vld [vmem:[%s483] sm:$0xf]
        %v552 = vld [vmem:[#allocation8] sm:$0xf]
        %v553 = vld [vmem:[#allocation8 + $0x4] sm:$0xf]
        %v554 = vld [vmem:[#allocation8 + $0x8] sm:$0xf]
        %v555 = vld [vmem:[#allocation8 + $0xc] sm:$0xf]
        %v556 = vld [vmem:[#allocation8 + $0x10] sm:$0xf]
        %v557 = vld [vmem:[#allocation8 + $0x14] sm:$0xf]
        %v558 = vld [vmem:[#allocation8 + $0x18] sm:$0xf]
        %v559 = vld [vmem:[#allocation8 + $0x1c] sm:$0xf]
        %v560 = vld [vmem:[#allocation8 + $0x20] sm:$0xf]
        %v561 = vld [vmem:[#allocation8 + $0x24] sm:$0xf]
        %v562 = vld [vmem:[#allocation8 + $0x28] sm:$0xf]
        %v563 = vld [vmem:[#allocation8 + $0x2c] sm:$0xf]
        %v564 = vld [vmem:[#allocation8 + $0x30] sm:$0xf]
        %v565 = vld [vmem:[#allocation8 + $0x34] sm:$0xf]
        %v566 = vld [vmem:[#allocation8 + $0x38] sm:$0xf]
        %v567 = vld [vmem:[#allocation8 + $0x3c] sm:$0xf]
        %v568 = vld [vmem:[%s7] sm:$0x1]
        %v570 = vlaneseq
        %v571 = vshrl.u32 %v570, 7
        %v572 = vsub.s32 0, %v571
        %v573 = vrot.slane %v568, %v572
        %v591 = vunpack.c.l.b16 %v552
        %v592 = vunpack.c.l.b16 %v553
        %v593 = vunpack.c.l.b16 %v554
        %v594 = vunpack.c.l.b16 %v555
        %v595 = vunpack.c.l.b16 %v556
        %v596 = vunpack.c.l.b16 %v557
        %v597 = vunpack.c.l.b16 %v558
        %v598 = vunpack.c.l.b16 %v559
        %v599 = vunpack.c.l.b16 %v560
        %v600 = vunpack.c.l.b16 %v561
        %v601 = vunpack.c.l.b16 %v562
        %v602 = vunpack.c.l.b16 %v563
        %v603 = vunpack.c.l.b16 %v564
        %v604 = vunpack.c.l.b16 %v565
        %v605 = vunpack.c.l.b16 %v566
        %v606 = vunpack.c.l.b16 %v567
        %v607 = vpack.c.b16 %v592, %v591
        %v608 = vpack.c.b16 %v594, %v593
        %v609 = vpack.c.b16 %v596, %v595
        %v610 = vpack.c.b16 %v598, %v597
        %v611 = vpack.c.b16 %v600, %v599
        %v612 = vpack.c.b16 %v602, %v601
        %v613 = vpack.c.b16 %v604, %v603
        %v614 = vpack.c.b16 %v606, %v605
        %623 = vmatprep.subr.bf16.mxu0 0
        %624 = vmatpush1.bf16.msra.mxu0 %v607
        %625 = vmatprep.subr.bf16.mxu0 0
        %626 = vmatpush1.bf16.msra.mxu0 %v608
        %627 = vmatprep.subr.bf16.mxu0 0
        %628 = vmatpush1.bf16.msra.mxu0 %v609
        %629 = vmatprep.subr.bf16.mxu0 0
        %630 = vmatpush1.bf16.msra.mxu0 %v610
        %631 = vmatprep.subr.bf16.mxu0 0
        %632 = vmatpush1.bf16.msra.mxu0 %v611
        %633 = vmatprep.subr.bf16.mxu0 0
        %634 = vmatpush1.bf16.msra.mxu0 %v612
        %635 = vmatprep.subr.bf16.mxu0 0
        %636 = vmatpush1.bf16.msra.mxu0 %v613
        %637 = vmatprep.subr.bf16.mxu0 0
        %638 = vmatpush1.bf16.msra.mxu0 %v614
        %639 = vmatprep.subr.bf16.mxu0 0
        %640 = vmatpush1.bf16.msra.mxu0 0
        %641 = vmatprep.subr.bf16.mxu0 0
        %642 = vmatpush1.bf16.msra.mxu0 0
        %643 = vmatprep.subr.bf16.mxu0 0
        %644 = vmatpush1.bf16.msra.mxu0 0
        %645 = vmatprep.subr.bf16.mxu0 0
        %646 = vmatpush1.bf16.msra.mxu0 0
        %647 = vmatprep.subr.bf16.mxu0 0
        %648 = vmatpush1.bf16.msra.mxu0 0
        %649 = vmatprep.subr.bf16.mxu0 0
        %650 = vmatpush1.bf16.msra.mxu0 0
        %651 = vmatprep.subr.bf16.mxu0 0
        %652 = vmatpush1.bf16.msra.mxu0 0
        %653 = vmatprep.subr.bf16.mxu0 0
        %654 = vmatpush1.bf16.msra.mxu0 0
        %655 = vmatprep.mubr.bf16.mxu0 0
        %656 = vmatmul.mubr.bf16.gmra.mrb[0].mxu0 %v549
        %v657 = vpop.f32.mrb[0].mxu0
        %v658 = vadd.f32 %v573, %v657
        %v659 = vpop.f32.mrb[0].mxu0
        %v660 = vpop.f32.mrb[0].mxu0
        %v661 = vpop.f32.mrb[0].mxu0
        %662 = vdwg.mxu0
        %v663 = vld [vmem:[#allocation10] sm:$0xf]
        %v664 = vld [vmem:[#allocation10 + $0x4] sm:$0xf]
        %v665 = vld [vmem:[#allocation10 + $0x8] sm:$0xf]
        %v666 = vld [vmem:[#allocation10 + $0xc] sm:$0xf]
        %v667 = vld [vmem:[#allocation10 + $0x10] sm:$0xf]
        %v668 = vld [vmem:[#allocation10 + $0x14] sm:$0xf]
        %v669 = vld [vmem:[#allocation10 + $0x18] sm:$0xf]
        %v670 = vld [vmem:[#allocation10 + $0x1c] sm:$0xf]
        %v671 = vld [vmem:[#allocation10 + $0x20] sm:$0xf]
        %v672 = vld [vmem:[#allocation10 + $0x24] sm:$0xf]
        %v673 = vld [vmem:[#allocation10 + $0x28] sm:$0xf]
        %v674 = vld [vmem:[#allocation10 + $0x2c] sm:$0xf]
        %v675 = vld [vmem:[#allocation10 + $0x30] sm:$0xf]
        %v676 = vld [vmem:[#allocation10 + $0x34] sm:$0xf]
        %v677 = vld [vmem:[#allocation10 + $0x38] sm:$0xf]
        %v678 = vld [vmem:[#allocation10 + $0x3c] sm:$0xf]
        %v679 = vld [vmem:[%s8] sm:$0x1]
        %v681 = vlaneseq
        %v682 = vshrl.u32 %v681, 7
        %v683 = vsub.s32 0, %v682
        %v684 = vrot.slane %v679, %v683
        %v702 = vunpack.c.l.b16 %v663
        %v703 = vunpack.c.l.b16 %v664
        %v704 = vunpack.c.l.b16 %v665
        %v705 = vunpack.c.l.b16 %v666
        %v706 = vunpack.c.l.b16 %v667
        %v707 = vunpack.c.l.b16 %v668
        %v708 = vunpack.c.l.b16 %v669
        %v709 = vunpack.c.l.b16 %v670
        %v710 = vunpack.c.l.b16 %v671
        %v711 = vunpack.c.l.b16 %v672
        %v712 = vunpack.c.l.b16 %v673
        %v713 = vunpack.c.l.b16 %v674
        %v714 = vunpack.c.l.b16 %v675
        %v715 = vunpack.c.l.b16 %v676
        %v716 = vunpack.c.l.b16 %v677
        %v717 = vunpack.c.l.b16 %v678
        %v718 = vpack.c.b16 %v703, %v702
        %v719 = vpack.c.b16 %v705, %v704
        %v720 = vpack.c.b16 %v707, %v706
        %v721 = vpack.c.b16 %v709, %v708
        %v722 = vpack.c.b16 %v711, %v710
        %v723 = vpack.c.b16 %v713, %v712
        %v724 = vpack.c.b16 %v715, %v714
        %v725 = vpack.c.b16 %v717, %v716
        %734 = vmatprep.subr.bf16.mxu0 0
        %735 = vmatpush1.bf16.msra.mxu0 %v718
        %736 = vmatprep.subr.bf16.mxu0 0
        %737 = vmatpush1.bf16.msra.mxu0 %v719
        %738 = vmatprep.subr.bf16.mxu0 0
        %739 = vmatpush1.bf16.msra.mxu0 %v720
        %740 = vmatprep.subr.bf16.mxu0 0
        %741 = vmatpush1.bf16.msra.mxu0 %v721
        %742 = vmatprep.subr.bf16.mxu0 0
        %743 = vmatpush1.bf16.msra.mxu0 %v722
        %744 = vmatprep.subr.bf16.mxu0 0
        %745 = vmatpush1.bf16.msra.mxu0 %v723
        %746 = vmatprep.subr.bf16.mxu0 0
        %747 = vmatpush1.bf16.msra.mxu0 %v724
        %748 = vmatprep.subr.bf16.mxu0 0
        %749 = vmatpush1.bf16.msra.mxu0 %v725
        %750 = vmatprep.subr.bf16.mxu0 0
        %751 = vmatpush1.bf16.msra.mxu0 0
        %752 = vmatprep.subr.bf16.mxu0 0
        %753 = vmatpush1.bf16.msra.mxu0 0
        %754 = vmatprep.subr.bf16.mxu0 0
        %755 = vmatpush1.bf16.msra.mxu0 0
        %756 = vmatprep.subr.bf16.mxu0 0
        %757 = vmatpush1.bf16.msra.mxu0 0
        %758 = vmatprep.subr.bf16.mxu0 0
        %759 = vmatpush1.bf16.msra.mxu0 0
        %760 = vmatprep.subr.bf16.mxu0 0
        %761 = vmatpush1.bf16.msra.mxu0 0
        %762 = vmatprep.subr.bf16.mxu0 0
        %763 = vmatpush1.bf16.msra.mxu0 0
        %764 = vmatprep.subr.bf16.mxu0 0
        %765 = vmatpush1.bf16.msra.mxu0 0
        %766 = vmatprep.mubr.bf16.mxu0 0
        %767 = vmatmul.mubr.bf16.gmra.mrb[0].mxu0 %v550
        %v768 = vpop.f32.mrb[0].mxu0
        %v769 = vadd.f32 %v684, %v768
        %v770 = vpop.f32.mrb[0].mxu0
        %v771 = vpop.f32.mrb[0].mxu0
        %v772 = vpop.f32.mrb[0].mxu0
        %773 = vdwg.mxu0
        %v774 = vld [vmem:[#allocation11] sm:$0xf]
        %v775 = vld [vmem:[#allocation11 + $0x4] sm:$0xf]
        %v776 = vld [vmem:[#allocation11 + $0x8] sm:$0xf]
        %v777 = vld [vmem:[#allocation11 + $0xc] sm:$0xf]
        %v778 = vld [vmem:[#allocation11 + $0x10] sm:$0xf]
        %v779 = vld [vmem:[#allocation11 + $0x14] sm:$0xf]
        %v780 = vld [vmem:[#allocation11 + $0x18] sm:$0xf]
        %v781 = vld [vmem:[#allocation11 + $0x1c] sm:$0xf]
        %v782 = vld [vmem:[#allocation11 + $0x20] sm:$0xf]
        %v783 = vld [vmem:[#allocation11 + $0x24] sm:$0xf]
        %v784 = vld [vmem:[#allocation11 + $0x28] sm:$0xf]
        %v785 = vld [vmem:[#allocation11 + $0x2c] sm:$0xf]
        %v786 = vld [vmem:[#allocation11 + $0x30] sm:$0xf]
        %v787 = vld [vmem:[#allocation11 + $0x34] sm:$0xf]
        %v788 = vld [vmem:[#allocation11 + $0x38] sm:$0xf]
        %v789 = vld [vmem:[#allocation11 + $0x3c] sm:$0xf]
        %v790 = vld [vmem:[%s9] sm:$0x1]
        %v792 = vlaneseq
        %v793 = vshrl.u32 %v792, 7
        %v794 = vsub.s32 0, %v793
        %v795 = vrot.slane %v790, %v794
        %v813 = vunpack.c.l.b16 %v774
        %v814 = vunpack.c.l.b16 %v775
        %v815 = vunpack.c.l.b16 %v776
        %v816 = vunpack.c.l.b16 %v777
        %v817 = vunpack.c.l.b16 %v778
        %v818 = vunpack.c.l.b16 %v779
        %v819 = vunpack.c.l.b16 %v780
        %v820 = vunpack.c.l.b16 %v781
        %v821 = vunpack.c.l.b16 %v782
        %v822 = vunpack.c.l.b16 %v783
        %v823 = vunpack.c.l.b16 %v784
        %v824 = vunpack.c.l.b16 %v785
        %v825 = vunpack.c.l.b16 %v786
        %v826 = vunpack.c.l.b16 %v787
        %v827 = vunpack.c.l.b16 %v788
        %v828 = vunpack.c.l.b16 %v789
        %v829 = vpack.c.b16 %v814, %v813
        %v830 = vpack.c.b16 %v816, %v815
        %v831 = vpack.c.b16 %v818, %v817
        %v832 = vpack.c.b16 %v820, %v819
        %v833 = vpack.c.b16 %v822, %v821
        %v834 = vpack.c.b16 %v824, %v823
        %v835 = vpack.c.b16 %v826, %v825
        %v836 = vpack.c.b16 %v828, %v827
        %845 = vmatprep.subr.bf16.mxu0 0
        %846 = vmatpush1.bf16.msra.mxu0 %v829
        %847 = vmatprep.subr.bf16.mxu0 0
        %848 = vmatpush1.bf16.msra.mxu0 %v830
        %849 = vmatprep.subr.bf16.mxu0 0
        %850 = vmatpush1.bf16.msra.mxu0 %v831
        %851 = vmatprep.subr.bf16.mxu0 0
        %852 = vmatpush1.bf16.msra.mxu0 %v832
        %853 = vmatprep.subr.bf16.mxu0 0
        %854 = vmatpush1.bf16.msra.mxu0 %v833
        %855 = vmatprep.subr.bf16.mxu0 0
        %856 = vmatpush1.bf16.msra.mxu0 %v834
        %857 = vmatprep.subr.bf16.mxu0 0
        %858 = vmatpush1.bf16.msra.mxu0 %v835
        %859 = vmatprep.subr.bf16.mxu0 0
        %860 = vmatpush1.bf16.msra.mxu0 %v836
        %861 = vmatprep.subr.bf16.mxu0 0
        %862 = vmatpush1.bf16.msra.mxu0 0
        %863 = vmatprep.subr.bf16.mxu0 0
        %864 = vmatpush1.bf16.msra.mxu0 0
        %865 = vmatprep.subr.bf16.mxu0 0
        %866 = vmatpush1.bf16.msra.mxu0 0
        %867 = vmatprep.subr.bf16.mxu0 0
        %868 = vmatpush1.bf16.msra.mxu0 0
        %869 = vmatprep.subr.bf16.mxu0 0
        %870 = vmatpush1.bf16.msra.mxu0 0
        %871 = vmatprep.subr.bf16.mxu0 0
        %872 = vmatpush1.bf16.msra.mxu0 0
        %873 = vmatprep.subr.bf16.mxu0 0
        %874 = vmatpush1.bf16.msra.mxu0 0
        %875 = vmatprep.subr.bf16.mxu0 0
        %876 = vmatpush1.bf16.msra.mxu0 0
        %877 = vmatprep.mubr.bf16.mxu0 0
        %878 = vmatmul.mubr.bf16.gmra.mrb[0].mxu0 %v551
        %v879 = vpop.f32.mrb[0].mxu0
        %v880 = vadd.f32 %v795, %v879
        %v881 = vpop.f32.mrb[0].mxu0
        %v882 = vpop.f32.mrb[0].mxu0
        %v883 = vpop.f32.mrb[0].mxu0
        %884 = vdwg.mxu0
        %v885 = vpack.c.bf16 %v658, %v658
        %v886 = vpack.c.bf16 %v769, %v769
        %887 = vmatprep.subr.bf16.mxu0 0
        %888 = vmatpush1.bf16.xpose.msra.mxu0 %v886
        %889 = vmatprep.subr.bf16.mxu0 0
        %890 = vmatpush1.bf16.xpose.msra.mxu0 0
        %891 = vmatprep.subr.bf16.mxu0 0
        %892 = vmatpush1.bf16.xpose.msra.mxu0 0
        %893 = vmatprep.subr.bf16.mxu0 0
        %894 = vmatpush1.bf16.xpose.msra.mxu0 0
        %895 = vmatprep.subr.bf16.mxu0 0
        %896 = vmatpush1.bf16.xpose.msra.mxu0 0
        %897 = vmatprep.subr.bf16.mxu0 0
        %898 = vmatpush1.bf16.xpose.msra.mxu0 0
        %899 = vmatprep.subr.bf16.mxu0 0
        %900 = vmatpush1.bf16.xpose.msra.mxu0 0
        %901 = vmatprep.subr.bf16.mxu0 0
        %902 = vmatpush1.bf16.xpose.msra.mxu0 0
        %903 = vmatprep.subr.bf16.mxu0 0
        %904 = vmatpush1.bf16.xpose.msra.mxu0 0
        %905 = vmatprep.subr.bf16.mxu0 0
        %906 = vmatpush1.bf16.xpose.msra.mxu0 0
        %907 = vmatprep.subr.bf16.mxu0 0
        %908 = vmatpush1.bf16.xpose.msra.mxu0 0
        %909 = vmatprep.subr.bf16.mxu0 0
        %910 = vmatpush1.bf16.xpose.msra.mxu0 0
        %911 = vmatprep.subr.bf16.mxu0 0
        %912 = vmatpush1.bf16.xpose.msra.mxu0 0
        %913 = vmatprep.subr.bf16.mxu0 0
        %914 = vmatpush1.bf16.xpose.msra.mxu0 0
        %915 = vmatprep.subr.bf16.mxu0 0
        %916 = vmatpush1.bf16.xpose.msra.mxu0 0
        %917 = vmatprep.subr.bf16.mxu0 0
        %918 = vmatpush1.bf16.xpose.msra.mxu0 0
        %919 = vmatprep.mubr.bf16.mxu0 0
        %920 = vmatmul.mubr.bf16.gmra.mrb[0].mxu0 %v885
        %v921 = vpop.f32.mrb[0].mxu0
        %v922 = vadd.f32 0.0, %v921
        %v923 = vpop.f32.mrb[0].mxu0
        %v924 = vpop.f32.mrb[0].mxu0
        %v925 = vpop.f32.mrb[0].mxu0
        %926 = vdwg.mxu0
        %v927 = vmul.f32 %v922, 0.25
        %vm928 = vcmask 64512
        %v929 = vsel %vm928, %v927, -inf
        %930 = vmax.xlane.f32.xlu0 %v929
        %v931 = vpop.xlane.xlu0 %930
        %v932 = vsub.f32 %v927, %v931
        %v933 = vmul.f32 %v932, 1.442695
        %v934 = vpow.pop %v933
        %v935 = vsel %vm928, %v934, 0.0
        %936 = vadd.xlane.f32.xlu0 %v935
        %v937 = vpop.xlane.xlu0 %936
        %v938 = vrcp.pop %v937
        %v939 = vmul.f32 %v934, %v938
        %v940 = vpack.c.bf16 %v939, %v939
        %v941 = vpack.c.bf16 %v880, %v880
        %v943 = vsel %vm928, %v940, 0
        %vm945 = vcmask 1043456
        %v947 = vsel %vm945, %v941, 0
        %949 = vmatprep.subr.bf16.mxu0 0
        %950 = vmatpush1.bf16.msra.mxu0 %v947
        %951 = vmatprep.subr.bf16.mxu0 0
        %952 = vmatpush1.bf16.msra.mxu0 0
        %953 = vmatprep.subr.bf16.mxu0 0
        %954 = vmatpush1.bf16.msra.mxu0 0
        %955 = vmatprep.subr.bf16.mxu0 0
        %956 = vmatpush1.bf16.msra.mxu0 0
        %957 = vmatprep.subr.bf16.mxu0 0
        %958 = vmatpush1.bf16.msra.mxu0 0
        %959 = vmatprep.subr.bf16.mxu0 0
        %960 = vmatpush1.bf16.msra.mxu0 0
        %961 = vmatprep.subr.bf16.mxu0 0
        %962 = vmatpush1.bf16.msra.mxu0 0
        %963 = vmatprep.subr.bf16.mxu0 0
        %964 = vmatpush1.bf16.msra.mxu0 0
        %965 = vmatprep.subr.bf16.mxu0 0
        %966 = vmatpush1.bf16.msra.mxu0 0
        %967 = vmatprep.subr.bf16.mxu0 0
        %968 = vmatpush1.bf16.msra.mxu0 0
        %969 = vmatprep.subr.bf16.mxu0 0
        %970 = vmatpush1.bf16.msra.mxu0 0
        %971 = vmatprep.subr.bf16.mxu0 0
        %972 = vmatpush1.bf16.msra.mxu0 0
        %973 = vmatprep.subr.bf16.mxu0 0
        %974 = vmatpush1.bf16.msra.mxu0 0
        %975 = vmatprep.subr.bf16.mxu0 0
        %976 = vmatpush1.bf16.msra.mxu0 0
        %977 = vmatprep.subr.bf16.mxu0 0
        %978 = vmatpush1.bf16.msra.mxu0 0
        %979 = vmatprep.subr.bf16.mxu0 0
        %980 = vmatpush1.bf16.msra.mxu0 0
        %981 = vmatprep.mubr.bf16.mxu0 0
        %982 = vmatmul.mubr.bf16.gmra.mrb[0].mxu0 %v943
        %v983 = vpop.f32.mrb[0].mxu0
        %v984 = vadd.f32 0.0, %v983
        %v985 = vpop.f32.mrb[0].mxu0
        %v986 = vpop.f32.mrb[0].mxu0
        %v987 = vpop.f32.mrb[0].mxu0
        %988 = vdwg.mxu0
        %v989 = vpack.c.bf16 %v984, %v984
        %v990 = vld [vmem:[#allocation13] sm:$0xf]
        %v991 = vld [vmem:[#allocation13 + $0x4] sm:$0xf]
        %v992 = vld [vmem:[#allocation13 + $0x8] sm:$0xf]
        %v993 = vld [vmem:[#allocation13 + $0xc] sm:$0xf]
        %v994 = vld [vmem:[#allocation13 + $0x10] sm:$0xf]
        %v995 = vld [vmem:[#allocation13 + $0x14] sm:$0xf]
        %v996 = vld [vmem:[#allocation13 + $0x18] sm:$0xf]
        %v997 = vld [vmem:[#allocation13 + $0x1c] sm:$0xf]
        %v998 = vld [vmem:[#allocation13 + $0x20] sm:$0xf]
        %v999 = vld [vmem:[#allocation13 + $0x24] sm:$0xf]
        %v1000 = vld [vmem:[#allocation13 + $0x28] sm:$0xf]
        %v1001 = vld [vmem:[#allocation13 + $0x2c] sm:$0xf]
        %v1002 = vld [vmem:[#allocation13 + $0x30] sm:$0xf]
        %v1003 = vld [vmem:[#allocation13 + $0x34] sm:$0xf]
        %v1004 = vld [vmem:[#allocation13 + $0x38] sm:$0xf]
        %v1005 = vld [vmem:[#allocation13 + $0x3c] sm:$0xf]
        %v1006 = vld [vmem:[%s10] sm:$0x1]
        %v1008 = vlaneseq
        %v1009 = vshrl.u32 %v1008, 7
        %v1010 = vsub.s32 0, %v1009
        %v1011 = vrot.slane %v1006, %v1010
        %v1029 = vunpack.c.l.b16 %v990
        %v1030 = vunpack.c.l.b16 %v991
        %v1031 = vunpack.c.l.b16 %v992
        %v1032 = vunpack.c.l.b16 %v993
        %v1033 = vunpack.c.l.b16 %v994
        %v1034 = vunpack.c.l.b16 %v995
        %v1035 = vunpack.c.l.b16 %v996
        %v1036 = vunpack.c.l.b16 %v997
        %v1037 = vunpack.c.l.b16 %v998
        %v1038 = vunpack.c.l.b16 %v999
        %v1039 = vunpack.c.l.b16 %v1000
        %v1040 = vunpack.c.l.b16 %v1001
        %v1041 = vunpack.c.l.b16 %v1002
        %v1042 = vunpack.c.l.b16 %v1003
        %v1043 = vunpack.c.l.b16 %v1004
        %v1044 = vunpack.c.l.b16 %v1005
        %v1045 = vpack.c.b16 %v1030, %v1029
        %v1046 = vpack.c.b16 %v1032, %v1031
        %v1047 = vpack.c.b16 %v1034, %v1033
        %v1048 = vpack.c.b16 %v1036, %v1035
        %v1049 = vpack.c.b16 %v1038, %v1037
        %v1050 = vpack.c.b16 %v1040, %v1039
        %v1051 = vpack.c.b16 %v1042, %v1041
        %v1052 = vpack.c.b16 %v1044, %v1043
        %1061 = vmatprep.subr.bf16.mxu0 0
        %1062 = vmatpush1.bf16.msra.mxu0 %v1045
        %1063 = vmatprep.subr.bf16.mxu0 0
        %1064 = vmatpush1.bf16.msra.mxu0 %v1046
        %1065 = vmatprep.subr.bf16.mxu0 0
        %1066 = vmatpush1.bf16.msra.mxu0 %v1047
        %1067 = vmatprep.subr.bf16.mxu0 0
        %1068 = vmatpush1.bf16.msra.mxu0 %v1048
        %1069 = vmatprep.subr.bf16.mxu0 0
        %1070 = vmatpush1.bf16.msra.mxu0 %v1049
        %1071 = vmatprep.subr.bf16.mxu0 0
        %1072 = vmatpush1.bf16.msra.mxu0 %v1050
        %1073 = vmatprep.subr.bf16.mxu0 0
        %1074 = vmatpush1.bf16.msra.mxu0 %v1051
        %1075 = vmatprep.subr.bf16.mxu0 0
        %1076 = vmatpush1.bf16.msra.mxu0 %v1052
        %1077 = vmatprep.subr.bf16.mxu0 0
        %1078 = vmatpush1.bf16.msra.mxu0 0
        %1079 = vmatprep.subr.bf16.mxu0 0
        %1080 = vmatpush1.bf16.msra.mxu0 0
        %1081 = vmatprep.subr.bf16.mxu0 0
        %1082 = vmatpush1.bf16.msra.mxu0 0
        %1083 = vmatprep.subr.bf16.mxu0 0
        %1084 = vmatpush1.bf16.msra.mxu0 0
        %1085 = vmatprep.subr.bf16.mxu0 0
        %1086 = vmatpush1.bf16.msra.mxu0 0
        %1087 = vmatprep.subr.bf16.mxu0 0
        %1088 = vmatpush1.bf16.msra.mxu0 0
        %1089 = vmatprep.subr.bf16.mxu0 0
        %1090 = vmatpush1.bf16.msra.mxu0 0
        %1091 = vmatprep.subr.bf16.mxu0 0
        %1092 = vmatpush1.bf16.msra.mxu0 0
        %1093 = vmatprep.mubr.bf16.mxu0 0
        %1094 = vmatmul.mubr.bf16.gmra.mrb[0].mxu0 %v989
        %v1095 = vpop.f32.mrb[0].mxu0
        %v1096 = vadd.f32 %v1011, %v1095
        %v1097 = vpop.f32.mrb[0].mxu0
        %v1098 = vpop.f32.mrb[0].mxu0
        %v1099 = vpop.f32.mrb[0].mxu0
        %1100 = vdwg.mxu0
        %1101 = vst [vmem:[%s547] sm:$0xff] %v1096
        %s1102 = sand.u32 %s303, 1
        %s1103 = scalar_lea.sflag [#allocation4], %s1102
        %s1104 = sand.u32 %s303, 1
        %s1105 = smul.addr %s1104, 8
        %s1106 = scalar_lea.vmem [#allocation14], %s1105
        // Predicated region
        $region93: #{tpu_custom_call.1} parent=63 // pred_check
          %p1107 = pneg %p313
        $region94: #{tpu_custom_call.1} parent=63 // pred_check_branch
          %1109 = sbr.rel (%p1107) target = $region96
        $region95: #{tpu_custom_call.1} parent=63 // pred_region
          %s1111 = ssub.s32 128, 128
          %1112 = vsyncadd %s1103, %s1111
          %s1113 = sadd.s32 %s38, %s37
          %s1114 = smul.addr %s1113, 128
          %s1115 = scalar_lea.hbm %s11, %s1114
          %s1117 = sshll.u32 %s1106, 4
          %s1118 = int_to_ptr.vmem [resolvable:$true] %s1117
          %1120 = dma.vmem_to_hbm [thread:$0]  %s1118, 128, %s1115, %s1103
        $region96: #{tpu_custom_call.1} parent=63 // pred_fallthru
          _
      $region64: #{tpu_custom_call.1} parent=5 // pred_fallthru
        _
      %p1121 = scmp.le.s32.totalorder 2, %s28
      // Predicated region
      $region97: #{tpu_custom_call.1} parent=5 // pred_check
        %p1122 = pneg %p1121
      $region98: #{tpu_custom_call.1} parent=5 // pred_check_branch
        %1124 = sbr.rel (%p1122) target = $region100
      $region99: #{tpu_custom_call.1} parent=5 // pred_region
        %s1125 = ssub.s32 %s28, 2
        // Predicated region
        $region101: #{tpu_custom_call.1} parent=99 // pred_check
          %p1126 = pneg %p319
        $region102: #{tpu_custom_call.1} parent=99 // pred_check_branch
          %1128 = sbr.rel (%p1126) target = $region104
        $region103: #{tpu_custom_call.1} parent=99 // pred_region
          %s1129 = sand.u32 %s304, 1
          %s1130 = scalar_lea.sflag [#allocation4], %s1129
          %s1131 = sand.u32 %s304, 1
          %s1132 = smul.addr %s1131, 8
          %s1133 = scalar_lea.vmem [#allocation14], %s1132
          %1134 = dma.done %s1130, 128
        $region104: #{tpu_custom_call.1} parent=99 // pred_fallthru
          _
      $region100: #{tpu_custom_call.1} parent=5 // pred_fallthru
        _
    $region6: #{tpu_custom_call.1} parent=1 // loop_footer
      %s32 = sadd.s32 1, %s28
    $region7: #{tpu_custom_call.1} parent=1 // loop_footer_branch
      %27 = sbr.rel target = $region3
    $region8: #{tpu_custom_call.1} parent=1 // loop_exit
      _
    %1135 = vsyncpa [#allocation3], 1
    %s1136 = scalar_lea.sflag [#allocation3], 1
    %1137 = vsyncpa %s1136, 1
    %1138 = vsyncpa [#allocation6], 1
    %s1139 = scalar_lea.sflag [#allocation6], 1
    %1140 = vsyncpa %s1139, 1
    %1141 = vsyncpa [#allocation9], 1
    %1142 = vsyncpa [#allocation12], 1
    %1143 = vsyncpa [#allocation4], 1
    %s1144 = scalar_lea.sflag [#allocation4], 1
    %1145 = vsyncpa %s1144, 1

</llo_original>
